<compile_context>
chip_gen: v7x
topology: tpu7x:2x2x1
jax: 0.10.0
libtpu: 0.0.40
codegen_flags: <defaults>
</compile_context>

<pallas_src>
import math

import jax
import jax.numpy as jnp
from jax.experimental import pallas as pl
from jax.experimental.pallas import tpu as pltpu

_SMOOTH = 1.0            # Dice() default smooth used by the module's forward.
_L1_LANE = 512           # lane width for the flattened L1 reduction
_FAST_PATH_BYTES = 6 << 20  # below this total input size, run the fused path


def _vmem_plan():
    """Per-input tile budget and scoped-VMEM limit, per TPU generation.

    2 inputs x 2 pipeline buffers x budget (+ tiny outputs + in-kernel f32
    temporaries) must stay inside the scoped limit:
      * v5e/v6e: 128 MiB physical -> 4 MiB tiles, raise scoped limit to 48 MiB
        (v5e's default scoped limit is only 16 MiB).
      * v7x / unknown: 64 MiB physical -> 2 MiB tiles, 32 MiB scoped limit.
    """
    try:
        vmem = int(getattr(pltpu.get_tpu_info(), "vmem_capacity_bytes", 64 << 20))
    except Exception:
        vmem = 64 << 20
    if vmem >= (128 << 20):
        return 4 << 20, 48 << 20
    return 2 << 20, 32 << 20


def _row_tile(rows):
    """Sublane (row) tile: a multiple-of-8 divisor of `rows`, else full extent
    (a block spanning the whole dimension is always legal)."""
    if rows <= 256:
        return rows
    for t in (256, 128, 64, 32, 16, 8):
        if rows % t == 0:
            return t
    # Degenerate; N*C is expected to be small for this loss.
    return rows


def _lane_plan(extent, row_tile, tile_bytes, min_steps=4):
    """Pick a lane tile (multiple of 128) and the (possibly padded) extent.

    * per-input tile (rows x ts x 4B) stays within `tile_bytes`
    * aims for >= `min_steps` grid steps so v7x's two TensorCores get work
    * prefers an exact divisor of `extent` (no padding copy); otherwise the
      caller zero-pads up to a tile multiple (exact for the sums computed).
    """
    rows8 = max(8, -(-row_tile // 8) * 8)          # VMEM pads rows to 8 sublanes
    cap = max(128, (tile_bytes // (rows8 * 4)) // 128 * 128)
    want_steps = min_steps if extent >= min_steps * 128 else 1
    target = max(128, min(cap, (extent // want_steps) // 128 * 128))
    if extent % 128 == 0:
        ts = 128
        for cand in range(target, 127, -128):
            if extent % cand == 0:
                ts = cand
                break
        if ts * 8 >= target or ts >= 4096:          # decent exact divisor found
            return ts, extent
    ts = target
    padded = -(-extent // ts) * ts
    return ts, padded


# ----------------------------- kernels ------------------------------------


def _dice_partial_kernel(p_ref, t_ref, inter_ref, psq_ref, tsq_ref):
    # (tr, ts) lane-dense tiles; per-row partial sums over the lane axis only
    # (no cross-sublane reduce, no per-step scalar accumulation).
    p = p_ref[...].astype(jnp.float32)
    t = t_ref[...].astype(jnp.float32)
    inter_ref[0] = jnp.sum(p * t, axis=-1, keepdims=True)   # (tr, 1)
    psq_ref[0] = jnp.sum(p * p, axis=-1, keepdims=True)
    tsq_ref[0] = jnp.sum(t * t, axis=-1, keepdims=True)


def _l1_partial_kernel(p_ref, t_ref, out_ref):
    d = jnp.abs(p_ref[...].astype(jnp.float32) - t_ref[...].astype(jnp.float32))
    out_ref[...] = jnp.sum(d, axis=-1, keepdims=True)        # (tr, 1) per-row


def _fused_small_kernel(ps_ref, ts_ref, pr_ref, tr_ref,
                        inter_ref, psq_ref, tsq_ref, l1_ref):
    # Whole-array VMEM blocks; one launch covers both tasks.
    p = ps_ref[...].astype(jnp.float32)
    t = ts_ref[...].astype(jnp.float32)
    inter_ref[...] = jnp.sum(p * t, axis=-1, keepdims=True)
    psq_ref[...] = jnp.sum(p * p, axis=-1, keepdims=True)
    tsq_ref[...] = jnp.sum(t * t, axis=-1, keepdims=True)
    d = jnp.abs(pr_ref[...].astype(jnp.float32) - tr_ref[...].astype(jnp.float32))
    l1_ref[...] = jnp.sum(d, axis=-1, keepdims=True)


# --------------------------- tiled streaming paths --------------------------


def _dice_channel_sums_tiled(pred_seg, tgt_seg, tile_bytes, vmem_limit):
    """Per-channel sum(p*t), sum(p*p), sum(t*t) over batch + spatial dims."""
    n, c = pred_seg.shape[0], pred_seg.shape[1]
    s = math.prod(pred_seg.shape[2:])
    rows = n * c
    # NCDHW -> (N*C, S): batch*channels on sublanes, spatial on the lane axis.
    p2 = pred_seg.reshape(rows, s)
    t2 = tgt_seg.reshape(rows, s)

    tr = _row_tile(rows)
    ts, s_pad = _lane_plan(s, tr, tile_bytes)
    if s_pad != s:
        # Zero padding is exact for the three sums (only hit for awkward S).
        pad = ((0, 0), (0, s_pad - s))
        p2 = jnp.pad(p2, pad)
        t2 = jnp.pad(t2, pad)
    n_r = rows // tr
    n_s = s_pad // ts

    in_spec = pl.BlockSpec((tr, ts), lambda r, q: (r, q))
    out_spec = pl.BlockSpec((1, tr, 1), lambda r, q: (q, r, 0))
    part = jax.ShapeDtypeStruct((n_s, rows, 1), jnp.float32)

    inter_p, psq_p, tsq_p = pl.pallas_call(
        _dice_partial_kernel,
        out_shape=(part, part, part),
        grid=(n_r, n_s),
        in_specs=[in_spec, in_spec],
        out_specs=(out_spec, out_spec, out_spec),
        compiler_params=pltpu.CompilerParams(
            dimension_semantics=("parallel", "parallel"),
            vmem_limit_bytes=vmem_limit),
    )(p2, t2)

    def per_channel(x):
        return jnp.sum(x, axis=0)[:, 0].reshape(n, c).sum(axis=0)

    return per_channel(inter_p), per_channel(psq_p), per_channel(tsq_p)


def _l1_sum_tiled(pred_reg, tgt_reg, tile_bytes, vmem_limit):
    """sum(|pred - tgt|) over all elements (divisor handled by the caller)."""
    total = math.prod(pred_reg.shape)
    p = pred_reg.reshape(-1)
    t = tgt_reg.reshape(-1)

    lane = _L1_LANE
    rows = -(-total // lane)
    tr_budget = max(8, min((tile_bytes // (lane * 4)) // 8 * 8, 4096))
    if rows >= 2 * tr_budget:
        tr = tr_budget
    elif rows > tr_budget:
        # Split into two balanced steps so both v7x TensorCores get work.
        tr = max(8, (-(-rows // 2) + 7) // 8 * 8)
    else:
        tr = max(8, -(-rows // 8) * 8)
    rows_pad = -(-rows // tr) * tr
    pad = rows_pad * lane - total
    if pad:
        # Zero padding is exact for |p - t|; the divisor stays `total`.
        p = jnp.pad(p, (0, pad))
        t = jnp.pad(t, (0, pad))
    p2 = p.reshape(rows_pad, lane)
    t2 = t.reshape(rows_pad, lane)
    n_r = rows_pad // tr

    parts = pl.pallas_call(
        _l1_partial_kernel,
        out_shape=jax.ShapeDtypeStruct((rows_pad, 1), jnp.float32),
        grid=(n_r,),
        in_specs=[pl.BlockSpec((tr, lane), lambda i: (i, 0))] * 2,
        out_specs=pl.BlockSpec((tr, 1), lambda i: (i, 0)),
        compiler_params=pltpu.CompilerParams(
            dimension_semantics=("parallel",),
            vmem_limit_bytes=vmem_limit),
    )(p2, t2)
    return jnp.sum(parts)


# ------------------------------ fused fast path -----------------------------


def _fused_small(pred_seg, tgt_seg, pred_reg, tgt_reg, vmem_limit):
    n, c = pred_seg.shape[0], pred_seg.shape[1]
    rows_seg = n * c
    ps2 = pred_seg.reshape(rows_seg, -1)
    ts2 = tgt_seg.reshape(rows_seg, -1)
    if pred_reg.ndim >= 2:
        pr2 = pred_reg.reshape(pred_reg.shape[0], -1)
        tr2 = tgt_reg.reshape(tgt_reg.shape[0], -1)
    else:
        pr2 = pred_reg.reshape(1, -1)
        tr2 = tgt_reg.reshape(1, -1)

    seg_part = jax.ShapeDtypeStruct((rows_seg, 1), jnp.float32)
    reg_part = jax.ShapeDtypeStruct((pr2.shape[0], 1), jnp.float32)

    inter_r, psq_r, tsq_r, l1_r = pl.pallas_call(
        _fused_small_kernel,
        out_shape=(seg_part, seg_part, seg_part, reg_part),
        compiler_params=pltpu.CompilerParams(vmem_limit_bytes=vmem_limit),
    )(ps2, ts2, pr2, tr2)

    inter_c = inter_r[:, 0].reshape(n, c).sum(axis=0)
    psq_c = psq_r[:, 0].reshape(n, c).sum(axis=0)
    tsq_c = tsq_r[:, 0].reshape(n, c).sum(axis=0)
    return inter_c, psq_c, tsq_c, jnp.sum(l1_r)


# --------------------------------- wrapper ----------------------------------


def multi_task_loss_seg_and_reg(pred_seg, tgt_seg, pred_reg, tgt_reg, log_vars,
                                *, force_tiled=False):
    tile_bytes, vmem_limit = _vmem_plan()
    count = math.prod(pred_reg.shape)
    total_in_bytes = sum(int(x.size) * x.dtype.itemsize
                         for x in (pred_seg, tgt_seg, pred_reg, tgt_reg))

    # ---- Task 0 & 1 reductions (single streaming pass over HBM) ----------
    # TODO(synk): `mean_metric` is not defined in the provided source; the
    # standard per-channel-mean soft-Dice implementation is assumed here.
    if (not force_tiled) and total_in_bytes <= _FAST_PATH_BYTES:
        inter_c, psq_c, tsq_c, l1_total = _fused_small(
            pred_seg, tgt_seg, pred_reg, tgt_reg, vmem_limit)
    else:
        inter_c, psq_c, tsq_c = _dice_channel_sums_tiled(
            pred_seg, tgt_seg, tile_bytes, vmem_limit)
        l1_total = _l1_sum_tiled(pred_reg, tgt_reg, tile_bytes, vmem_limit)

    dice_c = 1.0 - (2.0 * inter_c + _SMOOTH) / (psq_c + tsq_c + _SMOOTH)
    loss00 = jnp.mean(dice_c)
    loss10 = l1_total / count

    # ---- Uncertainty weighting (tiny scalar math in the wrapper) ---------
    lv = log_vars.astype(jnp.float32)
    loss0 = (0.5 / lv[0] ** 2) * loss00 + jnp.log(lv[0])
    loss1 = (0.5 / lv[1] ** 2) * loss10 + jnp.log(lv[1])
    return loss0 + loss1, loss00, lv[0], loss10, lv[1]


def multi_task_loss_seg_and_reg_ref(pred_seg, tgt_seg, pred_reg, tgt_reg, log_vars):
    c = pred_seg.shape[1]
    dice_sum = 0.0
    for ch in range(c):
        p = pred_seg[:, ch].astype(jnp.float32).reshape(-1)
        t = tgt_seg[:, ch].astype(jnp.float32).reshape(-1)
        inter = jnp.sum(p * t)
        dice_sum = dice_sum + (
            1.0 - (2.0 * inter + _SMOOTH) / (jnp.sum(p * p) + jnp.sum(t * t) + _SMOOTH))
    loss00 = dice_sum / c
    loss10 = jnp.mean(jnp.abs(pred_reg - tgt_reg))
    lv = log_vars.astype(jnp.float32)
    loss0 = 0.5 / lv[0] ** 2 * loss00 + jnp.log(lv[0])
    loss1 = 0.5 / lv[1] ** 2 * loss10 + jnp.log(lv[1])
    return loss0 + loss1, loss00, lv[0], loss10, lv[1]


if __name__ == "__main__":
    key = jax.random.PRNGKey(0)
    k0, k1, k2, k3 = jax.random.split(key, 4)

    # Task 0 (segmentation): small NCDHW probability / label volumes.
    N, C, D, H, W = 2, 4, 8, 16, 16
    pred_seg = jax.nn.sigmoid(jax.random.normal(k0, (N, C, D, H, W), dtype=jnp.float32))
    tgt_seg = (jax.random.uniform(k1, (N, C, D, H, W)) > 0.5).astype(jnp.float32)

    # Task 1 (regression): one-channel volume for the L1 head.
    pred_reg = jax.random.normal(k2, (N, 1, D, H, W), dtype=jnp.float32)
    tgt_reg = jax.random.normal(k3, (N, 1, D, H, W), dtype=jnp.float32)

    # nn.Parameter(torch.ones(task_num) * init_weights)
    log_vars = jnp.array([1.0, 1.5], dtype=jnp.float32)

    fn = jax.jit(multi_task_loss_seg_and_reg, static_argnames=("force_tiled",))
    ref = multi_task_loss_seg_and_reg_ref(pred_seg, tgt_seg, pred_reg, tgt_reg, log_vars)

    # Small-input fused fast path (the one these demo shapes take).
    out_fast = jax.block_until_ready(
        fn(pred_seg, tgt_seg, pred_reg, tgt_reg, log_vars))
    # Tiled streaming path (the one real volumes take), forced at small shapes.
    out_tiled = jax.block_until_ready(
        fn(pred_seg, tgt_seg, pred_reg, tgt_reg, log_vars, force_tiled=True))

    for out in (out_fast, out_tiled):
        for got, want in zip(out, ref):
            assert jnp.abs(got - want) < 1e-4, (out, ref)

    print("KERNEL_OK")
</pallas_src>

<mosaic_0001>
module attributes {stable_mosaic.version = 11 : i64} {
  func.func @_fused_small_kernel(%arg0: memref<8x2048xf32, #tpu.memory_space<vmem>>, %arg1: memref<8x2048xf32, #tpu.memory_space<vmem>>, %arg2: memref<2x2048xf32, #tpu.memory_space<vmem>>, %arg3: memref<2x2048xf32, #tpu.memory_space<vmem>>, %arg4: memref<8x1xf32, #tpu.memory_space<vmem>>, %arg5: memref<8x1xf32, #tpu.memory_space<vmem>>, %arg6: memref<8x1xf32, #tpu.memory_space<vmem>>, %arg7: memref<2x1xf32, #tpu.memory_space<vmem>>) attributes {dimension_semantics = [], scalar_prefetch = 0 : i64, scratch_operands = 0 : i64, tpu.core_type = #tpu.core_type<tc>} {
    %c0 = arith.constant 0 : index
    %c0_0 = arith.constant 0 : index
    %0 = vector.load %arg0[%c0, %c0_0] : memref<8x2048xf32, #tpu.memory_space<vmem>>, vector<8x2048xf32>
    %c0_1 = arith.constant 0 : index
    %c0_2 = arith.constant 0 : index
    %1 = vector.load %arg1[%c0_1, %c0_2] : memref<8x2048xf32, #tpu.memory_space<vmem>>, vector<8x2048xf32>
    %2 = arith.mulf %0, %1 : vector<8x2048xf32>
    %cst = arith.constant dense<0.000000e+00> : vector<8xf32>
    %3 = vector.multi_reduction <add>, %2, %cst [1] : vector<8x2048xf32> to vector<8xf32>
    %4 = vector.shape_cast %3 : vector<8xf32> to vector<8x1xf32>
    %c0_3 = arith.constant 0 : index
    %c0_4 = arith.constant 0 : index
    %5 = vector.load %arg4[%c0_3, %c0_4] : memref<8x1xf32, #tpu.memory_space<vmem>>, vector<8x1xf32>
    tpu.vector_store %arg4[%c0_3, %c0_4], %4 {strides = array<i32>} : memref<8x1xf32, #tpu.memory_space<vmem>>, vector<8x1xf32>,
    %6 = arith.mulf %0, %0 : vector<8x2048xf32>
    %cst_5 = arith.constant dense<0.000000e+00> : vector<8xf32>
    %7 = vector.multi_reduction <add>, %6, %cst_5 [1] : vector<8x2048xf32> to vector<8xf32>
    %8 = vector.shape_cast %7 : vector<8xf32> to vector<8x1xf32>
    %c0_6 = arith.constant 0 : index
    %c0_7 = arith.constant 0 : index
    %9 = vector.load %arg5[%c0_6, %c0_7] : memref<8x1xf32, #tpu.memory_space<vmem>>, vector<8x1xf32>
    tpu.vector_store %arg5[%c0_6, %c0_7], %8 {strides = array<i32>} : memref<8x1xf32, #tpu.memory_space<vmem>>, vector<8x1xf32>,
    %10 = arith.mulf %1, %1 : vector<8x2048xf32>
    %cst_8 = arith.constant dense<0.000000e+00> : vector<8xf32>
    %11 = vector.multi_reduction <add>, %10, %cst_8 [1] : vector<8x2048xf32> to vector<8xf32>
    %12 = vector.shape_cast %11 : vector<8xf32> to vector<8x1xf32>
    %c0_9 = arith.constant 0 : index
    %c0_10 = arith.constant 0 : index
    %13 = vector.load %arg6[%c0_9, %c0_10] : memref<8x1xf32, #tpu.memory_space<vmem>>, vector<8x1xf32>
    tpu.vector_store %arg6[%c0_9, %c0_10], %12 {strides = array<i32>} : memref<8x1xf32, #tpu.memory_space<vmem>>, vector<8x1xf32>,
    %c0_11 = arith.constant 0 : index
    %c0_12 = arith.constant 0 : index
    %14 = vector.load %arg2[%c0_11, %c0_12] : memref<2x2048xf32, #tpu.memory_space<vmem>>, vector<2x2048xf32>
    %c0_13 = arith.constant 0 : index
    %c0_14 = arith.constant 0 : index
    %15 = vector.load %arg3[%c0_13, %c0_14] : memref<2x2048xf32, #tpu.memory_space<vmem>>, vector<2x2048xf32>
    %16 = arith.subf %14, %15 : vector<2x2048xf32>
    %17 = math.absf %16 : vector<2x2048xf32>
    %cst_15 = arith.constant dense<0.000000e+00> : vector<2xf32>
    %18 = vector.multi_reduction <add>, %17, %cst_15 [1] : vector<2x2048xf32> to vector<2xf32>
    %19 = vector.shape_cast %18 : vector<2xf32> to vector<2x1xf32>
    %c0_16 = arith.constant 0 : index
    %c0_17 = arith.constant 0 : index
    %20 = vector.load %arg7[%c0_16, %c0_17] : memref<2x1xf32, #tpu.memory_space<vmem>>, vector<2x1xf32>
    tpu.vector_store %arg7[%c0_16, %c0_17], %19 {strides = array<i32>} : memref<2x1xf32, #tpu.memory_space<vmem>>, vector<2x1xf32>,
    return
  }
}

</mosaic_0001>

<llo_original>
// kernel: squeeze.9
$region0: #{squeeze.9}
  %s0 = inlined_call_operand.vmem [shape: f32[8], index: 0, kind: input, shape index: {}]
  %s1 = inlined_call_operand.vmem [shape: f32[2,4], index: 1, kind: output, shape index: {}]
  $region1: #{squeeze.9} parent=0
    #allocation0 [shape = 'u8[4096]{0}', space=vmem, size = 0x1000, scoped, tag = 'scoped mem for output reshape']
    #allocation1 [shape = 'u8[4096]{0}', space=vmem, size = 0x1000, scoped, tag = 'scoped mem for input reshape']
    %s3 = sshllo.u32 0, 1
    %v4 = vld [vmem:[%s0] sm:%s3]
    %5 = vst [vmem:[#allocation1] sm:%s3] %v4
    %v6 = vld [vmem:[#allocation1] sm:$0x1]
    %vm7 = vcmask 31744
    %8 = vst.msk [vmem:[#allocation0] sm:$0x1] %vm7, %v6
    %v9 = vld [vmem:[#allocation1] sm:$0x1]
    %10 = vrot.lane.b32.xlu0 %v9, 124
    %v11 = vpop.permute.xlu0 %10
    %vm12 = vcmask 31744
    %s13 = scalar_lea.vmem [#allocation0], 1
    %14 = vst.msk [vmem:[%s13] sm:$0x1] %vm12, %v11
    %s16 = sshllo.u32 0, 2
    %v18 = vld [vmem:[#allocation0] sm:%s16]
    %s19 = sshllo.u32 0, 2
    %20 = vst [vmem:[%s1] sm:%s19] %v18

// kernel: multi_task_loss_seg_and_reg.1
$region0: #{multi_task_loss_seg_and_reg.1}
  #allocation0 [shape = 'u32[]', space=smem, size = 0x4, offset = 0x4, fixed_abs, tag = 'smem constant byte address 0x4 - core index']
  #allocation1 [shape = 'u32[144,128]{1,0:T(1,128)}', space=vmem, size = 0x12000, scoped, tag = 'internal scratch']
  %s0 = inlined_call_operand.vmem [shape: f32[8,2048], index: 0, kind: input, shape index: {}]
  %s1 = inlined_call_operand.vmem [shape: f32[8,2048], index: 1, kind: input, shape index: {}]
  %s2 = inlined_call_operand.vmem [shape: f32[2,2048], index: 2, kind: input, shape index: {}]
  %s3 = inlined_call_operand.vmem [shape: f32[2,2048], index: 3, kind: input, shape index: {}]
  %s4 = inlined_call_operand.vmem [shape: f32[8,1], index: 4, kind: output, shape index: {0}]
  %s5 = inlined_call_operand.vmem [shape: f32[8,1], index: 5, kind: output, shape index: {1}]
  %s6 = inlined_call_operand.vmem [shape: f32[8,1], index: 6, kind: output, shape index: {2}]
  %s7 = inlined_call_operand.vmem [shape: f32[2,1], index: 7, kind: output, shape index: {3}]
  %8 = xla_tuple %s4, %s5, %s6, %s7
  %s9 = sld [smem:[#allocation0]]
  $region50: #{multi_task_loss_seg_and_reg.1} parent=0
    _
  %s11 = ssub.s32 1, %s9
  %s12 = scalar_select 0, %s11, %s9
  // Predicated region
  $region2: #{multi_task_loss_seg_and_reg.1} parent=0 // pred_check
    _
  $region3: #{multi_task_loss_seg_and_reg.1} parent=0 // pred_check_branch
    %14 = sbr.rel (0) target = $region5
  $region4: #{multi_task_loss_seg_and_reg.1} parent=0 // pred_region
    _
  $region5: #{multi_task_loss_seg_and_reg.1} parent=0 // pred_fallthru
    _
  // Predicated region
  $region6: #{multi_task_loss_seg_and_reg.1} parent=0 // pred_check
    _
  $region7: #{multi_task_loss_seg_and_reg.1} parent=0 // pred_check_branch
    %16 = sbr.rel (0) target = $region9
  $region8: #{multi_task_loss_seg_and_reg.1} parent=0 // pred_region
    _
  $region9: #{multi_task_loss_seg_and_reg.1} parent=0 // pred_fallthru
    _
  // Predicated region
  $region10: #{multi_task_loss_seg_and_reg.1} parent=0 // pred_check
    _
  $region11: #{multi_task_loss_seg_and_reg.1} parent=0 // pred_check_branch
    %18 = sbr.rel (0) target = $region13
  $region12: #{multi_task_loss_seg_and_reg.1} parent=0 // pred_region
    _
  $region13: #{multi_task_loss_seg_and_reg.1} parent=0 // pred_fallthru
    _
  // Predicated region
  $region14: #{multi_task_loss_seg_and_reg.1} parent=0 // pred_check
    _
  $region15: #{multi_task_loss_seg_and_reg.1} parent=0 // pred_check_branch
    %20 = sbr.rel (0) target = $region17
  $region16: #{multi_task_loss_seg_and_reg.1} parent=0 // pred_region
    _
  $region17: #{multi_task_loss_seg_and_reg.1} parent=0 // pred_fallthru
    _
  %v21 = vld [vmem:[%s0] sm:$0xff]
  %v22 = vld [vmem:[%s0 + $0x8] sm:$0xff]
  %v23 = vld [vmem:[%s0 + $0x10] sm:$0xff]
  %v24 = vld [vmem:[%s0 + $0x18] sm:$0xff]
  %v25 = vld [vmem:[%s0 + $0x20] sm:$0xff]
  %v26 = vld [vmem:[%s0 + $0x28] sm:$0xff]
  %v27 = vld [vmem:[%s0 + $0x30] sm:$0xff]
  %v28 = vld [vmem:[%s0 + $0x38] sm:$0xff]
  %v29 = vld [vmem:[%s0 + $0x40] sm:$0xff]
  %v30 = vld [vmem:[%s0 + $0x48] sm:$0xff]
  %v31 = vld [vmem:[%s0 + $0x50] sm:$0xff]
  %v32 = vld [vmem:[%s0 + $0x58] sm:$0xff]
  %v33 = vld [vmem:[%s0 + $0x60] sm:$0xff]
  %v34 = vld [vmem:[%s0 + $0x68] sm:$0xff]
  %v35 = vld [vmem:[%s0 + $0x70] sm:$0xff]
  %v36 = vld [vmem:[%s0 + $0x78] sm:$0xff]
  %v37 = vld [vmem:[%s1] sm:$0xff]
  %v38 = vld [vmem:[%s1 + $0x8] sm:$0xff]
  %v39 = vld [vmem:[%s1 + $0x10] sm:$0xff]
  %v40 = vld [vmem:[%s1 + $0x18] sm:$0xff]
  %v41 = vld [vmem:[%s1 + $0x20] sm:$0xff]
  %v42 = vld [vmem:[%s1 + $0x28] sm:$0xff]
  %v43 = vld [vmem:[%s1 + $0x30] sm:$0xff]
  %v44 = vld [vmem:[%s1 + $0x38] sm:$0xff]
  %v45 = vld [vmem:[%s1 + $0x40] sm:$0xff]
  %v46 = vld [vmem:[%s1 + $0x48] sm:$0xff]
  %v47 = vld [vmem:[%s1 + $0x50] sm:$0xff]
  %v48 = vld [vmem:[%s1 + $0x58] sm:$0xff]
  %v49 = vld [vmem:[%s1 + $0x60] sm:$0xff]
  %v50 = vld [vmem:[%s1 + $0x68] sm:$0xff]
  %v51 = vld [vmem:[%s1 + $0x70] sm:$0xff]
  %v52 = vld [vmem:[%s1 + $0x78] sm:$0xff]
  %v53 = vmul.f32 %v21, %v37
  %v54 = vmul.f32 %v22, %v38
  %v55 = vmul.f32 %v23, %v39
  %v56 = vmul.f32 %v24, %v40
  %v57 = vmul.f32 %v25, %v41
  %v58 = vmul.f32 %v26, %v42
  %v59 = vmul.f32 %v27, %v43
  %v60 = vmul.f32 %v28, %v44
  %v61 = vmul.f32 %v29, %v45
  %v62 = vmul.f32 %v30, %v46
  %v63 = vmul.f32 %v31, %v47
  %v64 = vmul.f32 %v32, %v48
  %v65 = vmul.f32 %v33, %v49
  %v66 = vmul.f32 %v34, %v50
  %v67 = vmul.f32 %v35, %v51
  %v68 = vmul.f32 %v36, %v52
  %v69 = vadd.f32 %v53, %v54
  %v70 = vadd.f32 %v69, %v55
  %v71 = vadd.f32 %v70, %v56
  %v72 = vadd.f32 %v71, %v57
  %v73 = vadd.f32 %v72, %v58
  %v74 = vadd.f32 %v73, %v59
  %v75 = vadd.f32 %v74, %v60
  %v76 = vadd.f32 %v75, %v61
  %v77 = vadd.f32 %v76, %v62
  %v78 = vadd.f32 %v77, %v63
  %v79 = vadd.f32 %v78, %v64
  %v80 = vadd.f32 %v79, %v65
  %v81 = vadd.f32 %v80, %v66
  %v82 = vadd.f32 %v81, %v67
  %v83 = vadd.f32 %v82, %v68
  %84 = vadd.xlane.f32.xlu0 %v83
  %v85 = vpop.xlane.xlu0 %84
  %vm86 = vcmask 7168
  %87 = vst.msk [vmem:[%s4] sm:$0xff] %vm86, %v85
  %v88 = vmul.f32 %v21, %v21
  %v89 = vmul.f32 %v22, %v22
  %v90 = vmul.f32 %v23, %v23
  %v91 = vmul.f32 %v24, %v24
  %v92 = vmul.f32 %v25, %v25
  %v93 = vmul.f32 %v26, %v26
  %v94 = vmul.f32 %v27, %v27
  %v95 = vmul.f32 %v28, %v28
  %v96 = vmul.f32 %v29, %v29
  %v97 = vmul.f32 %v30, %v30
  %v98 = vmul.f32 %v31, %v31
  %v99 = vmul.f32 %v32, %v32
  %v100 = vmul.f32 %v33, %v33
  %v101 = vmul.f32 %v34, %v34
  %v102 = vmul.f32 %v35, %v35
  %v103 = vmul.f32 %v36, %v36
  %v104 = vadd.f32 %v88, %v89
  %v105 = vadd.f32 %v104, %v90
  %v106 = vadd.f32 %v105, %v91
  %v107 = vadd.f32 %v106, %v92
  %v108 = vadd.f32 %v107, %v93
  %v109 = vadd.f32 %v108, %v94
  %v110 = vadd.f32 %v109, %v95
  %v111 = vadd.f32 %v110, %v96
  %v112 = vadd.f32 %v111, %v97
  %v113 = vadd.f32 %v112, %v98
  %v114 = vadd.f32 %v113, %v99
  %v115 = vadd.f32 %v114, %v100
  %v116 = vadd.f32 %v115, %v101
  %v117 = vadd.f32 %v116, %v102
  %v118 = vadd.f32 %v117, %v103
  %119 = vadd.xlane.f32.xlu0 %v118
  %v120 = vpop.xlane.xlu0 %119
  %121 = vst.msk [vmem:[%s5] sm:$0xff] %vm86, %v120
  %v122 = vmul.f32 %v37, %v37
  %v123 = vmul.f32 %v38, %v38
  %v124 = vmul.f32 %v39, %v39
  %v125 = vmul.f32 %v40, %v40
  %v126 = vmul.f32 %v41, %v41
  %v127 = vmul.f32 %v42, %v42
  %v128 = vmul.f32 %v43, %v43
  %v129 = vmul.f32 %v44, %v44
  %v130 = vmul.f32 %v45, %v45
  %v131 = vmul.f32 %v46, %v46
  %v132 = vmul.f32 %v47, %v47
  %v133 = vmul.f32 %v48, %v48
  %v134 = vmul.f32 %v49, %v49
  %v135 = vmul.f32 %v50, %v50
  %v136 = vmul.f32 %v51, %v51
  %v137 = vmul.f32 %v52, %v52
  %v138 = vadd.f32 %v122, %v123
  %v139 = vadd.f32 %v138, %v124
  %v140 = vadd.f32 %v139, %v125
  %v141 = vadd.f32 %v140, %v126
  %v142 = vadd.f32 %v141, %v127
  %v143 = vadd.f32 %v142, %v128
  %v144 = vadd.f32 %v143, %v129
  %v145 = vadd.f32 %v144, %v130
  %v146 = vadd.f32 %v145, %v131
  %v147 = vadd.f32 %v146, %v132
  %v148 = vadd.f32 %v147, %v133
  %v149 = vadd.f32 %v148, %v134
  %v150 = vadd.f32 %v149, %v135
  %v151 = vadd.f32 %v150, %v136
  %v152 = vadd.f32 %v151, %v137
  %153 = vadd.xlane.f32.xlu0 %v152
  %v154 = vpop.xlane.xlu0 %153
  %155 = vst.msk [vmem:[%s6] sm:$0xff] %vm86, %v154
  %v156 = vld [vmem:[%s2] sm:$0xff]
  %v157 = vld [vmem:[%s2 + $0x8] sm:$0xff]
  %v158 = vld [vmem:[%s2 + $0x10] sm:$0xff]
  %v159 = vld [vmem:[%s2 + $0x18] sm:$0xff]
  %v160 = vld [vmem:[%s3] sm:$0xff]
  %v161 = vld [vmem:[%s3 + $0x8] sm:$0xff]
  %v162 = vld [vmem:[%s3 + $0x10] sm:$0xff]
  %v163 = vld [vmem:[%s3 + $0x18] sm:$0xff]
  %v164 = vsub.f32 %v156, %v160
  %v165 = vsub.f32 %v157, %v161
  %v166 = vsub.f32 %v158, %v162
  %v167 = vsub.f32 %v159, %v163
  %v168 = vand.u32 2147483647, %v164
  %v169 = vand.u32 2147483647, %v165
  %v170 = vand.u32 2147483647, %v166
  %v171 = vand.u32 2147483647, %v167
  %v176 = vcombine.high %v168, %v168
  %v178 = vunpack.c.l.s4 1983009808
  %v179 = vunpack.c.0.s8 %v178
  %v180 = vlaneseq
  %v181 = vshrl.u32 %v180, 7
  %v182 = vsub.s32 %v179, %v181
  %v183 = vrot.slane %v168, %v182
  %v185 = vunpack.c.l.s4 1983009808
  %v186 = vunpack.c.0.s8 %v185
  %v187 = vlaneseq
  %v188 = vshrl.u32 %v187, 7
  %v189 = vsub.s32 %v186, %v188
  %v190 = vrot.slane %v176, %v189
  %v191 = vcombine.high %v183, %v183
  %v192 = vcombine.high %v190, %v190
  %v193 = vcombine.high %v169, %v169
  %v195 = vunpack.c.l.s4 1983009808
  %v196 = vunpack.c.0.s8 %v195
  %v197 = vlaneseq
  %v198 = vshrl.u32 %v197, 7
  %v199 = vsub.s32 %v196, %v198
  %v200 = vrot.slane %v169, %v199
  %v202 = vunpack.c.l.s4 1983009808
  %v203 = vunpack.c.0.s8 %v202
  %v204 = vlaneseq
  %v205 = vshrl.u32 %v204, 7
  %v206 = vsub.s32 %v203, %v205
  %v207 = vrot.slane %v193, %v206
  %v208 = vcombine.high %v200, %v200
  %v209 = vcombine.high %v207, %v207
  %v210 = vcombine.high %v170, %v170
  %v212 = vunpack.c.l.s4 1983009808
  %v213 = vunpack.c.0.s8 %v212
  %v214 = vlaneseq
  %v215 = vshrl.u32 %v214, 7
  %v216 = vsub.s32 %v213, %v215
  %v217 = vrot.slane %v170, %v216
  %v219 = vunpack.c.l.s4 1983009808
  %v220 = vunpack.c.0.s8 %v219
  %v221 = vlaneseq
  %v222 = vshrl.u32 %v221, 7
  %v223 = vsub.s32 %v220, %v222
  %v224 = vrot.slane %v210, %v223
  %v225 = vcombine.high %v217, %v217
  %v226 = vcombine.high %v224, %v224
  %v227 = vcombine.high %v171, %v171
  %v229 = vunpack.c.l.s4 1983009808
  %v230 = vunpack.c.0.s8 %v229
  %v231 = vlaneseq
  %v232 = vshrl.u32 %v231, 7
  %v233 = vsub.s32 %v230, %v232
  %v234 = vrot.slane %v171, %v233
  %v236 = vunpack.c.l.s4 1983009808
  %v237 = vunpack.c.0.s8 %v236
  %v238 = vlaneseq
  %v239 = vshrl.u32 %v238, 7
  %v240 = vsub.s32 %v237, %v239
  %v241 = vrot.slane %v227, %v240
  %v242 = vcombine.high %v234, %v234
  %v243 = vcombine.high %v241, %v241
  %vm260 = vcmask 1041408
  %v261 = vsel %vm260, %v183, 0.0
  %v262 = vsel %vm260, %v191, 0.0
  %v263 = vadd.f32 %v261, %v262
  %v264 = vsel %vm260, %v190, 0.0
  %v265 = vadd.f32 %v263, %v264
  %v266 = vsel %vm260, %v192, 0.0
  %v267 = vadd.f32 %v265, %v266
  %v268 = vsel %vm260, %v200, 0.0
  %v269 = vadd.f32 %v267, %v268
  %v270 = vsel %vm260, %v208, 0.0
  %v271 = vadd.f32 %v269, %v270
  %v272 = vsel %vm260, %v207, 0.0
  %v273 = vadd.f32 %v271, %v272
  %v274 = vsel %vm260, %v209, 0.0
  %v275 = vadd.f32 %v273, %v274
  %v276 = vsel %vm260, %v217, 0.0
  %v277 = vadd.f32 %v275, %v276
  %v278 = vsel %vm260, %v225, 0.0
  %v279 = vadd.f32 %v277, %v278
  %v280 = vsel %vm260, %v224, 0.0
  %v281 = vadd.f32 %v279, %v280
  %v282 = vsel %vm260, %v226, 0.0
  %v283 = vadd.f32 %v281, %v282
  %v284 = vsel %vm260, %v234, 0.0
  %v285 = vadd.f32 %v283, %v284
  %v286 = vsel %vm260, %v242, 0.0
  %v287 = vadd.f32 %v285, %v286
  %v288 = vsel %vm260, %v241, 0.0
  %v289 = vadd.f32 %v287, %v288
  %v290 = vsel %vm260, %v243, 0.0
  %v291 = vadd.f32 %v289, %v290
  %292 = vadd.xlane.f32.xlu0 %v291
  %v293 = vpop.xlane.xlu0 %292
  %vm294 = vcmask 1024
  %295 = vst.msk [vmem:[%s7] sm:$0x3] %vm294, %v293
  // Predicated region
  $region18: #{multi_task_loss_seg_and_reg.1} parent=0 // pred_check
    _
  $region19: #{multi_task_loss_seg_and_reg.1} parent=0 // pred_check_branch
    %297 = sbr.rel (0) target = $region21
  $region20: #{multi_task_loss_seg_and_reg.1} parent=0 // pred_region
    _
  $region21: #{multi_task_loss_seg_and_reg.1} parent=0 // pred_fallthru
    _
  // Predicated region
  $region22: #{multi_task_loss_seg_and_reg.1} parent=0 // pred_check
    _
  $region23: #{multi_task_loss_seg_and_reg.1} parent=0 // pred_check_branch
    %299 = sbr.rel (0) target = $region25
  $region24: #{multi_task_loss_seg_and_reg.1} parent=0 // pred_region
    _
  $region25: #{multi_task_loss_seg_and_reg.1} parent=0 // pred_fallthru
    _
  // Predicated region
  $region26: #{multi_task_loss_seg_and_reg.1} parent=0 // pred_check
    _
  $region27: #{multi_task_loss_seg_and_reg.1} parent=0 // pred_check_branch
    %301 = sbr.rel (0) target = $region29
  $region28: #{multi_task_loss_seg_and_reg.1} parent=0 // pred_region
    _
  $region29: #{multi_task_loss_seg_and_reg.1} parent=0 // pred_fallthru
    _
  // Predicated region
  $region30: #{multi_task_loss_seg_and_reg.1} parent=0 // pred_check
    _
  $region31: #{multi_task_loss_seg_and_reg.1} parent=0 // pred_check_branch
    %303 = sbr.rel (0) target = $region33
  $region32: #{multi_task_loss_seg_and_reg.1} parent=0 // pred_region
    _
  $region33: #{multi_task_loss_seg_and_reg.1} parent=0 // pred_fallthru
    _
  // Predicated region
  $region34: #{multi_task_loss_seg_and_reg.1} parent=0 // pred_check
    _
  $region35: #{multi_task_loss_seg_and_reg.1} parent=0 // pred_check_branch
    %305 = sbr.rel (0) target = $region37
  $region36: #{multi_task_loss_seg_and_reg.1} parent=0 // pred_region
    _
  $region37: #{multi_task_loss_seg_and_reg.1} parent=0 // pred_fallthru
    _
  // Predicated region
  $region38: #{multi_task_loss_seg_and_reg.1} parent=0 // pred_check
    _
  $region39: #{multi_task_loss_seg_and_reg.1} parent=0 // pred_check_branch
    %307 = sbr.rel (0) target = $region41
  $region40: #{multi_task_loss_seg_and_reg.1} parent=0 // pred_region
    _
  $region41: #{multi_task_loss_seg_and_reg.1} parent=0 // pred_fallthru
    _
  // Predicated region
  $region42: #{multi_task_loss_seg_and_reg.1} parent=0 // pred_check
    _
  $region43: #{multi_task_loss_seg_and_reg.1} parent=0 // pred_check_branch
    %309 = sbr.rel (0) target = $region45
  $region44: #{multi_task_loss_seg_and_reg.1} parent=0 // pred_region
    _
  $region45: #{multi_task_loss_seg_and_reg.1} parent=0 // pred_fallthru
    _
  // Predicated region
  $region46: #{multi_task_loss_seg_and_reg.1} parent=0 // pred_check
    _
  $region47: #{multi_task_loss_seg_and_reg.1} parent=0 // pred_check_branch
    %311 = sbr.rel (0) target = $region49
  $region48: #{multi_task_loss_seg_and_reg.1} parent=0 // pred_region
    _
  $region49: #{multi_task_loss_seg_and_reg.1} parent=0 // pred_fallthru
    _

</llo_original>
